<compile_context>
chip_gen: v7x
topology: tpu7x:2x2x1
jax: 0.10.0
libtpu: 0.0.40
codegen_flags: <defaults>
</compile_context>

<pallas_src>
import functools

import jax
import jax.numpy as jnp
from jax.experimental import pallas as pl
from jax.experimental.pallas import tpu as pltpu


# --------------------------------------------------------------------------- #
# VMEM sizing helpers                                                          #
# --------------------------------------------------------------------------- #
def _vmem_capacity_bytes():
    try:
        info = pltpu.get_tpu_info()
        cap = getattr(info, "vmem_capacity_bytes", None)
        if cap:
            return int(cap)
    except Exception:
        pass
    # Generation-aware fallback: v4/v5e/v6e have 128 MiB VMEM per core, v7x 64 MiB.
    try:
        kind = jax.devices()[0].device_kind.lower()
        if "v7" in kind:
            return 64 * 1024 * 1024
        if "v4" in kind or "v5" in kind or "v6" in kind:
            return 128 * 1024 * 1024
    except Exception:
        pass
    return 64 * 1024 * 1024            # conservative default


def _pick_col_tile(n, d, w_itemsize, budget):
    """Output-column tile for the cond matmul.  Prefer 512/256 (MXU-256 friendly
    on v6e/v7x); keep the double-buffered (D, TN) weight block within budget."""
    if n % 128 != 0:
        return n                        # small / odd widths: single full block
    for t in (512, 256, 128):
        if n % t == 0 and 2 * d * t * w_itemsize <= budget:
            return t
    return 128


def _pick_row_tile(seq, hidden, in_bytes, out_bytes, budget):
    """Row tile for the norm/modulate kernel: double-buffered input + output
    tiles plus one f32 tile of working slack per row."""
    per_row = hidden * (2 * in_bytes + 2 * out_bytes + 4)
    ts = budget // max(per_row, 1)
    ts = int(max(8, min(ts, 2048)))
    ts = (ts // 8) * 8                  # sublane-aligned
    if ts >= seq:
        return seq                      # whole sequence fits in one block
    return ts


def _ensure_grid_steps(ts, seq, bsz, min_steps=4):
    """Shrink the row tile if needed so the flattened grid has enough steps for
    an even 2-TensorCore (megacore) split on v7x."""
    if seq < 64 or bsz >= min_steps:
        return ts
    while ts > 64 and bsz * pl.cdiv(seq, ts) < min_steps:
        ts = max(64, ((ts // 2) // 8) * 8)
    return ts


# --------------------------------------------------------------------------- #
# Conditioning path: scale_shift = SiLU(cond) @ W + b   (b already holds +1)   #
# --------------------------------------------------------------------------- #
def _cond_kernel(c_ref, w_ref, b_ref, o_ref):
    # c_ref: (B, D)   w_ref: (D, TN)   b_ref: (1, TN)   o_ref: (B, TN) f32
    c = c_ref[...].astype(jnp.float32)
    h = (c * jax.nn.sigmoid(c)).astype(w_ref.dtype)          # SiLU in f32 (EUP)
    acc = jnp.dot(h, w_ref[...], preferred_element_type=jnp.float32)
    o_ref[...] = acc + b_ref[...].astype(jnp.float32)


def _cond_scale_shift(cond, w, b, *, vmem_limit):
    """Returns Linear(SiLU(cond)) with shape (B, 2*D) in f32."""
    bsz, d = cond.shape
    n = w.shape[1]                      # 2 * D
    tn = _pick_col_tile(n, d, w.dtype.itemsize, vmem_limit // 2)
    b2d = b.reshape(1, n)
    return pl.pallas_call(
        _cond_kernel,
        out_shape=jax.ShapeDtypeStruct((bsz, n), jnp.float32),
        grid_spec=pltpu.PrefetchScalarGridSpec(
            num_scalar_prefetch=0,
            grid=(n // tn,),
            in_specs=[
                pl.BlockSpec((bsz, d), lambda j: (0, 0)),    # resident across j
                pl.BlockSpec((d, tn), lambda j: (0, j)),
                pl.BlockSpec((1, tn), lambda j: (0, j)),
            ],
            out_specs=pl.BlockSpec((bsz, tn), lambda j: (0, j)),
        ),
        compiler_params=pltpu.CompilerParams(
            dimension_semantics=("parallel",),
            vmem_limit_bytes=vmem_limit,
        ),
    )(cond, w, b2d)


# --------------------------------------------------------------------------- #
# Main path: LayerNorm (no affine) fused with scale * x_norm + shift           #
# --------------------------------------------------------------------------- #
def _norm_mod_kernel(x_ref, ss_ref, o_ref, *, eps, inv_h):
    # x_ref: (1, TS, D)   ss_ref: (1, 2, D) f32 (row 0: 1+scale, row 1: shift)
    x = x_ref[...].astype(jnp.float32)
    sum_x = jnp.sum(x, axis=-1, keepdims=True)
    sum_x2 = jnp.sum(x * x, axis=-1, keepdims=True)           # single pass over x
    mu = sum_x * inv_h
    var = jnp.maximum(sum_x2 * inv_h - mu * mu, 0.0)           # guard cancellation
    r = jax.lax.rsqrt(var + eps)
    scale = ss_ref[:, 0:1, :]                                  # (1, 1, D), has +1 folded
    shift = ss_ref[:, 1:2, :]
    o_ref[...] = ((x - mu) * r * scale + shift).astype(o_ref.dtype)


def ada_layer_norm_continuous(x, cond_embed, w, b, *, eps=1e-5):
    """x: (B, S, D), cond_embed: (B, D), w: (D, 2D), b: (2D,)."""
    bsz, seq, d = x.shape

    cap = _vmem_capacity_bytes()
    vmem_limit = int(min(cap * 0.85, 112 * 1024 * 1024))

    # Fold the '+1' of (1 + scale) into the scale-half of the bias at trace time.
    b_fold = jnp.concatenate([b[:d] + 1.0, b[d:]]).astype(b.dtype)

    # scale_shift = Linear(SiLU(cond)) + folded bias, f32.  Reshape (no copy) to
    # (B, 2, D) so the main kernel picks scale/shift without host-side slicing.
    ss = _cond_scale_shift(cond_embed, w, b_fold, vmem_limit=vmem_limit)
    ss = ss.reshape(bsz, 2, d)

    budget = int(cap * 0.65)
    ts = _pick_row_tile(seq, d, x.dtype.itemsize, x.dtype.itemsize, budget)
    ts = _ensure_grid_steps(ts, seq, bsz)
    n_st = pl.cdiv(seq, ts)

    kernel = functools.partial(_norm_mod_kernel, eps=float(eps), inv_h=1.0 / d)

    # Flattened 1-D parallel grid: balanced megacore split even for bsz==1/odd.
    return pl.pallas_call(
        kernel,
        out_shape=jax.ShapeDtypeStruct((bsz, seq, d), x.dtype),
        grid_spec=pltpu.PrefetchScalarGridSpec(
            num_scalar_prefetch=0,
            grid=(bsz * n_st,),
            in_specs=[
                pl.BlockSpec((1, ts, d), lambda i: (i // n_st, i % n_st, 0)),
                pl.BlockSpec((1, 2, d), lambda i: (i // n_st, 0, 0)),
            ],
            out_specs=pl.BlockSpec((1, ts, d), lambda i: (i // n_st, i % n_st, 0)),
        ),
        compiler_params=pltpu.CompilerParams(
            dimension_semantics=("parallel",),
            vmem_limit_bytes=vmem_limit,
        ),
    )(x, ss)


if __name__ == "__main__":
    key = jax.random.PRNGKey(0)
    k_x, k_c, k_w, k_b = jax.random.split(key, 4)

    batch, seq, hidden = 2, 8, 32
    x = jax.random.normal(k_x, (batch, seq, hidden), dtype=jnp.float32)
    cond = jax.random.normal(k_c, (batch, hidden), dtype=jnp.float32)

    # nn.Linear(embed_dim, embed_dim*2) params, stored as (D, 2D) / (2D,).
    w = jax.random.normal(k_w, (hidden, 2 * hidden), dtype=jnp.float32) / jnp.sqrt(hidden)
    b = jax.random.normal(k_b, (2 * hidden,), dtype=jnp.float32) * 0.02

    out = ada_layer_norm_continuous(x, cond, w, b, eps=1e-5)
    jax.block_until_ready(out)

    # Pure-JAX reference (same math as the PyTorch module).
    h = cond * jax.nn.sigmoid(cond)
    embed = h @ w + b
    scale_r, shift_r = embed[:, :hidden], embed[:, hidden:]
    mu = jnp.mean(x, axis=-1, keepdims=True)
    var = jnp.mean((x - mu) ** 2, axis=-1, keepdims=True)
    xn = (x - mu) * jax.lax.rsqrt(var + 1e-5)
    ref = xn * (1.0 + scale_r)[:, None, :] + shift_r[:, None, :]

    assert jnp.allclose(out, ref, atol=1e-4, rtol=1e-4), "mismatch vs reference"
    print("KERNEL_OK")
</pallas_src>

<mosaic_0001>
module attributes {stable_mosaic.version = 11 : i64} {
  func.func @_cond_kernel(%arg0: i32, %arg1: memref<2x32xf32, #tpu.memory_space<vmem>>, %arg2: memref<32x64xf32, #tpu.memory_space<vmem>>, %arg3: memref<1x64xf32, #tpu.memory_space<vmem>>, %arg4: memref<2x64xf32, #tpu.memory_space<vmem>>) attributes {dimension_semantics = [#tpu.dimension_semantics<parallel>], iteration_bounds = array<i64: 1>, scalar_prefetch = 0 : i64, scratch_operands = 0 : i64, tpu.core_type = #tpu.core_type<tc>, window_params = [{pipeline_mode = #tpu.pipeline_mode<synchronous>, transform_indices = @transform_0, window_bounds = array<i64: 2, 32>}, {transform_indices = @transform_1, window_bounds = array<i64: 32, 64>}, {transform_indices = @transform_2, window_bounds = array<i64: 1, 64>}, {transform_indices = @transform_3, window_bounds = array<i64: 2, 64>}]} {
    %c0 = arith.constant 0 : index
    %c0_0 = arith.constant 0 : index
    %0 = vector.load %arg1[%c0, %c0_0] : memref<2x32xf32, #tpu.memory_space<vmem>>, vector<2x32xf32>
    %1 = arith.negf %0 : vector<2x32xf32>
    %2 = math.exp %1 : vector<2x32xf32>
    %cst = arith.constant 1.000000e+00 : f32
    %3 = vector.broadcast %cst : f32 to vector<2x32xf32>
    %4 = arith.addf %3, %2 : vector<2x32xf32>
    %5 = arith.divf %3, %4 : vector<2x32xf32>
    %6 = arith.mulf %0, %5 : vector<2x32xf32>
    %c0_1 = arith.constant 0 : index
    %c0_2 = arith.constant 0 : index
    %7 = vector.load %arg2[%c0_1, %c0_2] : memref<32x64xf32, #tpu.memory_space<vmem>>, vector<32x64xf32>
    %cst_3 = arith.constant dense<0.000000e+00> : vector<2x64xf32>
    %8 = tpu.matmul %6, %7, %cst_3 {dimension_numbers = #tpu.dot_dimension_numbers<[1], [0], [0], [1], [0, 0, 1, 1], [], []>} : vector<2x32xf32>, vector<32x64xf32>, vector<2x64xf32> -> vector<2x64xf32>
    %c0_4 = arith.constant 0 : index
    %c0_5 = arith.constant 0 : index
    %9 = vector.load %arg3[%c0_4, %c0_5] : memref<1x64xf32, #tpu.memory_space<vmem>>, vector<1x64xf32>
    %10 = vector.broadcast %9 : vector<1x64xf32> to vector<2x64xf32>
    %11 = arith.addf %8, %10 : vector<2x64xf32>
    %c0_6 = arith.constant 0 : index
    %c0_7 = arith.constant 0 : index
    %12 = vector.load %arg4[%c0_6, %c0_7] : memref<2x64xf32, #tpu.memory_space<vmem>>, vector<2x64xf32>
    tpu.vector_store %arg4[%c0_6, %c0_7], %11 {strides = array<i32>} : memref<2x64xf32, #tpu.memory_space<vmem>>, vector<2x64xf32>,
    return
  }
  func.func @transform_0(%arg0: i32) -> (i32, i32) {
    %c0_i32 = arith.constant 0 : i32
    %c0_i32_0 = arith.constant 0 : i32
    %c0_i32_1 = arith.constant 0 : i32
    return %c0_i32, %c0_i32_0 : i32, i32
  }
  func.func @transform_1(%arg0: i32) -> (i32, i32) {
    %c0_i32 = arith.constant 0 : i32
    %c0_i32_0 = arith.constant 0 : i32
    return %c0_i32, %arg0 : i32, i32
  }
  func.func @transform_2(%arg0: i32) -> (i32, i32) {
    %c0_i32 = arith.constant 0 : i32
    %c0_i32_0 = arith.constant 0 : i32
    return %c0_i32, %arg0 : i32, i32
  }
  func.func @transform_3(%arg0: i32) -> (i32, i32) {
    %c0_i32 = arith.constant 0 : i32
    %c0_i32_0 = arith.constant 0 : i32
    return %c0_i32, %arg0 : i32, i32
  }
}

</mosaic_0001>

<llo_original>
// kernel: tpu_custom_call.1
$region0: #{tpu_custom_call.1}
  #allocation0 [shape = 'u32[]', space=smem, size = 0x4, offset = 0x4, fixed_abs, tag = 'smem constant byte address 0x4 - core index']
  #allocation1 [shape = 'u32[144,128]{1,0:T(1,128)}', space=vmem, size = 0x12000, scoped, tag = 'internal scratch']
  %s0 = inlined_call_operand.hbm [shape: f32[2,32], index: 0, kind: input, shape index: {}]
  %s1 = inlined_call_operand.hbm [shape: f32[32,64], index: 1, kind: input, shape index: {}]
  %s2 = inlined_call_operand.vmem [shape: f32[1,64], index: 2, kind: input, shape index: {}]
  %s3 = inlined_call_operand.hbm [shape: f32[2,64], index: 3, kind: output, shape index: {}]
  %s4 = sld [smem:[#allocation0]]
  $region30: #{tpu_custom_call.1} parent=0
    _
  %s6 = ssub.s32 1, %s4
  %s7 = scalar_select 0, %s6, %s4
  $region1: #{tpu_custom_call.1} parent=0
    #allocation2 [shape = 'u8[1024]{0}', space=vmem, size = 0x400, scoped, tag = 'input window, operand 0, single buffered']
    #allocation3 [shape = 's32[1]{0}', space=sflag, size = 0x4, scoped, tag = 'scoped memory for tpu_custom_call.1']
    #allocation4 [shape = 's32[1]{0}', space=sflag, size = 0x4, scoped, tag = 'scoped memory for tpu_custom_call.1']
    #allocation5 [shape = 'u8[16384]{0}', space=vmem, size = 0x4000, scoped, tag = 'input window, operand 1, single buffered']
    #allocation6 [shape = 's32[1]{0}', space=sflag, size = 0x4, scoped, tag = 'scoped memory for tpu_custom_call.1']
    #allocation7 [shape = 'u8[1024]{0}', space=vmem, size = 0x400, scoped, tag = 'output window, operand 0, single buffered']
    %8 = vsyncpa [#allocation3], 0
    %9 = vsyncpa [#allocation6], 0
    %10 = vsyncpa [#allocation4], 0
    // Predicated region
    $region2: #{tpu_custom_call.1} parent=1 // pred_check
      _
    $region3: #{tpu_custom_call.1} parent=1 // pred_check_branch
      %12 = sbr.rel (0) target = $region5
    $region4: #{tpu_custom_call.1} parent=1 // pred_region
      %s14 = ssub.s32 32, 32
      %15 = vsyncadd [#allocation3], %s14
      %s17 = sshll.u32 [#allocation2], 4
      %s18 = int_to_ptr.vmem [resolvable:$true] %s17
      %20 = dma.hbm_to_vmem [thread:$0]  %s0, 32, %s18, [#allocation3]
    $region5: #{tpu_custom_call.1} parent=1 // pred_fallthru
      _
    // Predicated region
    $region6: #{tpu_custom_call.1} parent=1 // pred_check
      _
    $region7: #{tpu_custom_call.1} parent=1 // pred_check_branch
      %22 = sbr.rel (0) target = $region9
    $region8: #{tpu_custom_call.1} parent=1 // pred_region
      %s24 = ssub.s32 512, 512
      %25 = vsyncadd [#allocation6], %s24
      %s26 = sshll.u32 [#allocation5], 4
      %s27 = int_to_ptr.vmem [resolvable:$true] %s26
      %32 = dma.hbm_to_vmem [thread:$0]  %s1, 512, %s27, [#allocation6], 128, 128, 8
    $region9: #{tpu_custom_call.1} parent=1 // pred_fallthru
      _
    // Predicated region
    $region10: #{tpu_custom_call.1} parent=1 // pred_check
      _
    $region11: #{tpu_custom_call.1} parent=1 // pred_check_branch
      %34 = sbr.rel (0) target = $region13
    $region12: #{tpu_custom_call.1} parent=1 // pred_region
      _
    $region13: #{tpu_custom_call.1} parent=1 // pred_fallthru
      _
    // Predicated region
    $region14: #{tpu_custom_call.1} parent=1 // pred_check
      _
    $region15: #{tpu_custom_call.1} parent=1 // pred_check_branch
      %36 = sbr.rel (0) target = $region17
    $region16: #{tpu_custom_call.1} parent=1 // pred_region
      %37 = dma.done [#allocation3], 32
    $region17: #{tpu_custom_call.1} parent=1 // pred_fallthru
      _
    // Predicated region
    $region18: #{tpu_custom_call.1} parent=1 // pred_check
      _
    $region19: #{tpu_custom_call.1} parent=1 // pred_check_branch
      %39 = sbr.rel (0) target = $region21
    $region20: #{tpu_custom_call.1} parent=1 // pred_region
      %40 = dma.done [#allocation6], 512
    $region21: #{tpu_custom_call.1} parent=1 // pred_fallthru
      _
    %v41 = vld [vmem:[#allocation2] sm:$0x3]
    %v42 = vxor.u32 %v41, 2147483648
    %v43 = vmul.f32 %v42, 1.442695
    %v44 = vpow.pop %v43
    %v45 = vadd.f32 %v44, 1.0
    %v46 = vrcp.pop %v45
    %v47 = vmul.f32 1.0, %v46
    %v48 = vmul.f32 %v41, %v47
    %v49 = vld [vmem:[#allocation5] sm:$0xff]
    %v50 = vld [vmem:[#allocation5 + $0x8] sm:$0xff]
    %v51 = vld [vmem:[#allocation5 + $0x10] sm:$0xff]
    %v52 = vld [vmem:[#allocation5 + $0x18] sm:$0xff]
    %v53 = vld [vmem:[%s2] sm:$0x1]
    %v55 = vlaneseq
    %v56 = vshrl.u32 %v55, 7
    %v57 = vsub.s32 0, %v56
    %v58 = vrot.slane %v53, %v57
    %vm60 = vcmask 261120
    %v62 = vsel %vm60, %v48, 0
    %64 = vmatprep.subr.mxu0 0.0
    %65 = vmatpush1.msra.mxu0 %v49
    %66 = vmatprep.subr.mxu0 0.0
    %67 = vmatpush1.msra.mxu0 %v50
    %68 = vmatprep.subr.mxu0 0.0
    %69 = vmatpush1.msra.mxu0 %v51
    %70 = vmatprep.subr.mxu0 0.0
    %71 = vmatpush1.msra.mxu0 %v52
    %72 = vmatprep.subr.mxu0 0.0
    %73 = vmatpush1.msra.mxu0 0.0
    %74 = vmatprep.subr.mxu0 0.0
    %75 = vmatpush1.msra.mxu0 0.0
    %76 = vmatprep.subr.mxu0 0.0
    %77 = vmatpush1.msra.mxu0 0.0
    %78 = vmatprep.subr.mxu0 0.0
    %79 = vmatpush1.msra.mxu0 0.0
    %80 = vmatprep.subr.mxu0 0.0
    %81 = vmatpush1.msra.mxu0 0.0
    %82 = vmatprep.subr.mxu0 0.0
    %83 = vmatpush1.msra.mxu0 0.0
    %84 = vmatprep.subr.mxu0 0.0
    %85 = vmatpush1.msra.mxu0 0.0
    %86 = vmatprep.subr.mxu0 0.0
    %87 = vmatpush1.msra.mxu0 0.0
    %88 = vmatprep.subr.mxu0 0.0
    %89 = vmatpush1.msra.mxu0 0.0
    %90 = vmatprep.subr.mxu0 0.0
    %91 = vmatpush1.msra.mxu0 0.0
    %92 = vmatprep.subr.mxu0 0.0
    %93 = vmatpush1.msra.mxu0 0.0
    %94 = vmatprep.subr.mxu0 0.0
    %95 = vmatpush1.msra.mxu0 0.0
    %96 = vmatprep.subr.mxu0 0.0
    %97 = vmatpush1.msra.mxu0 0.0
    %98 = vmatprep.subr.mxu0 0.0
    %99 = vmatpush1.msra.mxu0 0.0
    %100 = vmatprep.subr.mxu0 0.0
    %101 = vmatpush1.msra.mxu0 0.0
    %102 = vmatprep.subr.mxu0 0.0
    %103 = vmatpush1.msra.mxu0 0.0
    %104 = vmatprep.subr.mxu0 0.0
    %105 = vmatpush1.msra.mxu0 0.0
    %106 = vmatprep.subr.mxu0 0.0
    %107 = vmatpush1.msra.mxu0 0.0
    %108 = vmatprep.subr.mxu0 0.0
    %109 = vmatpush1.msra.mxu0 0.0
    %110 = vmatprep.subr.mxu0 0.0
    %111 = vmatpush1.msra.mxu0 0.0
    %112 = vmatprep.subr.mxu0 0.0
    %113 = vmatpush1.msra.mxu0 0.0
    %114 = vmatprep.subr.mxu0 0.0
    %115 = vmatpush1.msra.mxu0 0.0
    %116 = vmatprep.subr.mxu0 0.0
    %117 = vmatpush1.msra.mxu0 0.0
    %118 = vmatprep.subr.mxu0 0.0
    %119 = vmatpush1.msra.mxu0 0.0
    %120 = vmatprep.subr.mxu0 0.0
    %121 = vmatpush1.msra.mxu0 0.0
    %122 = vmatprep.subr.mxu0 0.0
    %123 = vmatpush1.msra.mxu0 0.0
    %124 = vmatprep.subr.mxu0 0.0
    %125 = vmatpush1.msra.mxu0 0.0
    %126 = vmatprep.subr.mxu0 0.0
    %127 = vmatpush1.msra.mxu0 0.0
    %128 = vmatprep.mubr.f32.mxu0 0.0
    %129 = vmatmul.mubr.f32.gmra.mrb[0].mxu0 %v62
    %v130 = vpop.f32.mrb[0].mxu0
    %v131 = vadd.f32 %v58, %v130
    %v132 = vpop.f32.mrb[0].mxu0
    %133 = vdwg.mxu0
    %vm134 = vcmask 517120
    %135 = vst.msk [vmem:[#allocation7] sm:$0x3] %vm134, %v131
    // Predicated region
    $region22: #{tpu_custom_call.1} parent=1 // pred_check
      _
    $region23: #{tpu_custom_call.1} parent=1 // pred_check_branch
      %137 = sbr.rel (0) target = $region25
    $region24: #{tpu_custom_call.1} parent=1 // pred_region
      %s139 = ssub.s32 32, 32
      %140 = vsyncadd [#allocation4], %s139
      %s142 = sshll.u32 [#allocation7], 4
      %s143 = int_to_ptr.vmem [resolvable:$true] %s142
      %145 = dma.vmem_to_hbm [thread:$0]  %s143, 32, %s3, [#allocation4]
    $region25: #{tpu_custom_call.1} parent=1 // pred_fallthru
      _
    // Predicated region
    $region26: #{tpu_custom_call.1} parent=1 // pred_check
      _
    $region27: #{tpu_custom_call.1} parent=1 // pred_check_branch
      %147 = sbr.rel (0) target = $region29
    $region28: #{tpu_custom_call.1} parent=1 // pred_region
      %148 = dma.done [#allocation4], 32
    $region29: #{tpu_custom_call.1} parent=1 // pred_fallthru
      _
    %149 = vsyncpa [#allocation3], 1
    %150 = vsyncpa [#allocation6], 1
    %151 = vsyncpa [#allocation4], 1

</llo_original>
